<compile_context>
chip_gen: v7x
topology: tpu7x:2x2x1
jax: 0.10.0
libtpu: 0.0.40
codegen_flags: <defaults>
</compile_context>

<pallas_src>
import functools

import jax
import jax.numpy as jnp
from jax.experimental import pallas as pl
from jax.experimental.pallas import tpu as pltpu

K = 4           # ConvTranspose2d kernel size
S = K * K       # spatial size of the 4x4 output
_EPS = 1e-7


def _round_up(x, m):
    return (x + m - 1) // m * m


def genblock_init_kernel(xw_ref, wb_ref, p_ref, bm_ref, o_ref, *, cs, cpad):
    inv_s = 1.0 / S
    inv_sm1 = 1.0 / (S - 1)

    # --- 1) merged GEMM: [ConvT(1x1) | mean-Linear+bias | std-Linear+bias] ---
    # bf16 (or f32) operands, f32 accumulation.
    z = jnp.dot(xw_ref[...], wb_ref[...], preferred_element_type=jnp.float32)
    y = z[:, :cs]                              # (TB, CS)   conv out, spatial fastest
    m = z[:, cs:cs + cpad]                     # (TB, CPAD) style mean (pad lanes = 0)
    s = z[:, cs + cpad:cs + 2 * cpad]          # (TB, CPAD) style std  (pad lanes = 0)

    # --- 2) spatial stats: two zero-free pooling matmuls, kept in f32 ---
    sum_y = jnp.dot(y, p_ref[...], preferred_element_type=jnp.float32)        # (TB, CPAD)
    sum_y2 = jnp.dot(y * y, p_ref[...], preferred_element_type=jnp.float32)   # (TB, CPAD)

    mean_c = sum_y * inv_s
    var_c = jnp.maximum((sum_y2 - mean_c * sum_y) * inv_sm1, 0.0)   # unbiased, clamped
    std_c = jnp.sqrt(var_c)
    a = s / (std_c + _EPS)        # per-channel AdaIN scale  (TB, CPAD)
    b = m - mean_c * a            # per-channel AdaIN shift  (TB, CPAD)

    # --- 3) broadcast a / b over the 16 spatial slots (one-hot mask matmuls) ---
    a_e = jnp.dot(a, bm_ref[...], preferred_element_type=jnp.float32)   # (TB, CS)
    b_e = jnp.dot(b, bm_ref[...], preferred_element_type=jnp.float32)   # (TB, CS)

    # Fused AdaIN affine + ReLU over the lane-dense (TB, CS) tile.
    o_ref[...] = jnp.maximum(y * a_e + b_e, 0.0)


def make_gen_block_init(conv_w, mean_w, mean_b, std_w, std_b, *,
                        mxu_dtype=jnp.bfloat16, tile_b=256):
    """Build the fused GenBlockInit forward.

    conv_w : (Cin, Cout, 4, 4)  (PyTorch ConvTranspose2d weight layout)
    mean_w : (Cout, Wc)   mean_b : (Cout,)
    std_w  : (Cout, Wc)   std_b  : (Cout,)
    Returns forward(x: (B, Cin, 1, 1), w: (B, Wc)) -> (B, Cout, 4, 4) float32.
    """
    f32 = jnp.float32
    Cin, Cout = conv_w.shape[0], conv_w.shape[1]
    Wc = mean_w.shape[1]
    CS = Cout * S
    CPAD = _round_up(Cout, 128)            # 128-lane-aligned channel blocks
    KIN = _round_up(Cin + Wc + 1, 128)     # padded contraction dim
    NOUT = CS + 2 * CPAD

    # Merged block-diagonal weight, built ONCE (hoisted off the per-call path).
    wb = jnp.zeros((KIN, NOUT), f32)
    wb = wb.at[:Cin, :CS].set(conv_w.reshape(Cin, CS).astype(f32))             # spatial fastest
    wb = wb.at[Cin:Cin + Wc, CS:CS + Cout].set(mean_w.T.astype(f32))
    wb = wb.at[Cin:Cin + Wc, CS + CPAD:CS + CPAD + Cout].set(std_w.T.astype(f32))
    wb = wb.at[Cin + Wc, CS:CS + Cout].set(mean_b.astype(f32))                 # ones col carries biases
    wb = wb.at[Cin + Wc, CS + CPAD:CS + CPAD + Cout].set(std_b.astype(f32))
    wb = wb.astype(mxu_dtype)

    # Pooling matrix: P[r, c] = 1 iff r // S == c  (sums each channel's 16 slots).
    chan_of_col = jnp.arange(CS, dtype=jnp.int32) // S
    P = (chan_of_col[:, None] == jnp.arange(CPAD, dtype=jnp.int32)[None, :]).astype(f32)
    # Broadcast mask is just P^T: expands per-channel values over the 16 slots.
    BM = P.T

    kernel = functools.partial(genblock_init_kernel, cs=CS, cpad=CPAD)

    @jax.jit
    def forward(x, w):
        B = x.shape[0]
        assert x.shape[1:] == (Cin, 1, 1) and w.shape == (B, Wc)

        # tile_b=256 fits the 32 MiB scoped-VMEM default on v7x comfortably;
        # v6e can use 512, v5e smaller.  Rounded to 16 for bf16 sublane packing.
        tb = min(tile_b, _round_up(B, 16))
        b_pad = _round_up(B, tb)

        # Merged input [x | w | 1 | 0-pad], cast once to the MXU dtype.
        xw = jnp.zeros((b_pad, KIN), f32)
        xw = xw.at[:B, :Cin].set(x.reshape(B, Cin).astype(f32))
        xw = xw.at[:B, Cin:Cin + Wc].set(w.astype(f32))
        xw = xw.at[:B, Cin + Wc].set(1.0)
        xw = xw.astype(mxu_dtype)

        flops = b_pad * (2 * KIN * NOUT + 4 * CS * CPAD + 4 * CPAD * CS + 12 * CS)
        cost = pl.CostEstimate(
            flops=flops,
            transcendentals=b_pad * CPAD,                      # sqrt per (row, channel)
            bytes_accessed=(xw.size * xw.dtype.itemsize
                            + wb.size * wb.dtype.itemsize
                            + (P.size + BM.size) * 4
                            + b_pad * CS * 4),
        )

        # TODO(synk): emit bf16 output (out_shape dtype) once the downstream
        # block accepts it — halves HBM writeback at production B.
        out = pl.pallas_call(
            kernel,
            out_shape=jax.ShapeDtypeStruct((b_pad, CS), f32),
            grid=(b_pad // tb,),
            in_specs=[
                pl.BlockSpec((tb, KIN), lambda i: (i, 0)),       # batch-tiled input
                pl.BlockSpec((KIN, NOUT), lambda i: (0, 0)),     # resident merged weight
                pl.BlockSpec((CS, CPAD), lambda i: (0, 0)),      # resident pooling matrix
                pl.BlockSpec((CPAD, CS), lambda i: (0, 0)),      # resident broadcast mask
            ],
            out_specs=pl.BlockSpec((tb, CS), lambda i: (i, 0)),  # lane-dense output
            compiler_params=pltpu.CompilerParams(
                dimension_semantics=("parallel",)),
            cost_estimate=cost,
        )(xw, wb, P, BM)
        return out[:B].reshape(B, Cout, K, K)

    return forward


def reference(x, w, conv_w, mean_w, mean_b, std_w, std_b):
    """Plain-JAX replica of the PyTorch forward, for verification."""
    f32 = jnp.float32
    y = jnp.einsum('bc,coij->boij', x[:, :, 0, 0].astype(f32), conv_w.astype(f32))
    mean = y.mean(axis=(2, 3), keepdims=True)
    std = jnp.std(y, axis=(2, 3), keepdims=True, ddof=1)      # torch unbiased std
    yn = (y - mean) / (std + _EPS)
    m = (w.astype(f32) @ mean_w.T.astype(f32) + mean_b.astype(f32))[:, :, None, None]
    s = (w.astype(f32) @ std_w.T.astype(f32) + std_b.astype(f32))[:, :, None, None]
    return jnp.maximum(yn * s + m, 0.0)


if __name__ == "__main__":
    B, Cin, Cout, Wc = 2, 8, 16, 32

    key = jax.random.PRNGKey(0)
    k1, k2, k3, k4, k5 = jax.random.split(key, 5)
    x = jax.random.normal(k1, (B, Cin, 1, 1), dtype=jnp.float32)
    w = jax.random.normal(k2, (B, Wc), dtype=jnp.float32)

    # Deterministic parameters (shapes follow the PyTorch module).
    conv_w = 0.1 * jax.random.normal(k3, (Cin, Cout, K, K), dtype=jnp.float32)
    mean_w = 0.1 * jax.random.normal(k4, (Cout, Wc), dtype=jnp.float32)
    std_w = 0.1 * jax.random.normal(k5, (Cout, Wc), dtype=jnp.float32)
    mean_b = jnp.zeros((Cout,), jnp.float32)   # nn.init.zeros_(self.mean.bias)
    std_b = jnp.ones((Cout,), jnp.float32)     # nn.init.ones_(self.std.bias)

    ref = reference(x, w, conv_w, mean_w, mean_b, std_w, std_b)

    # --- f32 MXU path: tight parity with the PyTorch forward ---
    fwd_f32 = make_gen_block_init(conv_w, mean_w, mean_b, std_w, std_b,
                                  mxu_dtype=jnp.float32)
    out_f32 = jax.block_until_ready(fwd_f32(x, w))
    assert out_f32.shape == (B, Cout, K, K)
    assert jnp.allclose(out_f32, ref, atol=1e-4, rtol=1e-4), "f32 path mismatch"

    # --- bf16 MXU path (production default): compare against a reference that
    #     rounds the GEMM operands to bf16 exactly as the kernel does. ---
    fwd_bf16 = make_gen_block_init(conv_w, mean_w, mean_b, std_w, std_b,
                                   mxu_dtype=jnp.bfloat16)
    out_bf16 = jax.block_until_ready(fwd_bf16(x, w))
    bf = lambda a: a.astype(jnp.bfloat16).astype(jnp.float32)
    ref_bf16 = reference(bf(x), bf(w), bf(conv_w), bf(mean_w), bf(mean_b),
                         bf(std_w), bf(std_b))
    assert jnp.allclose(out_bf16, ref_bf16, atol=2e-3, rtol=2e-3), "bf16 path mismatch"

    print("KERNEL_OK")
</pallas_src>

<mosaic_0001>
module attributes {stable_mosaic.version = 11 : i64} {
  func.func @genblock_init_kernel(%arg0: i32, %arg1: memref<16x128xf32, #tpu.memory_space<vmem>>, %arg2: memref<128x512xf32, #tpu.memory_space<vmem>>, %arg3: memref<256x128xf32, #tpu.memory_space<vmem>>, %arg4: memref<128x256xf32, #tpu.memory_space<vmem>>, %arg5: memref<16x256xf32, #tpu.memory_space<vmem>>) attributes {dimension_semantics = [#tpu.dimension_semantics<parallel>], iteration_bounds = array<i64: 1>, scalar_prefetch = 0 : i64, scratch_operands = 0 : i64, tpu.core_type = #tpu.core_type<tc>, window_params = [{transform_indices = @transform_0, window_bounds = array<i64: 16, 128>}, {pipeline_mode = #tpu.pipeline_mode<synchronous>, transform_indices = @transform_1, window_bounds = array<i64: 128, 512>}, {pipeline_mode = #tpu.pipeline_mode<synchronous>, transform_indices = @transform_2, window_bounds = array<i64: 256, 128>}, {pipeline_mode = #tpu.pipeline_mode<synchronous>, transform_indices = @transform_3, window_bounds = array<i64: 128, 256>}, {transform_indices = @transform_4, window_bounds = array<i64: 16, 256>}]} {
    %c0 = arith.constant 0 : index
    %c0_0 = arith.constant 0 : index
    %0 = vector.load %arg1[%c0, %c0_0] : memref<16x128xf32, #tpu.memory_space<vmem>>, vector<16x128xf32>
    %c0_1 = arith.constant 0 : index
    %c0_2 = arith.constant 0 : index
    %1 = vector.load %arg2[%c0_1, %c0_2] : memref<128x512xf32, #tpu.memory_space<vmem>>, vector<128x512xf32>
    %cst = arith.constant dense<0.000000e+00> : vector<16x512xf32>
    %2 = tpu.matmul %0, %1, %cst {dimension_numbers = #tpu.dot_dimension_numbers<[1], [0], [0], [1], [0, 0, 1, 1], [], []>} : vector<16x128xf32>, vector<128x512xf32>, vector<16x512xf32> -> vector<16x512xf32>
    %3 = vector.extract_strided_slice %2 {offsets = [0, 0], sizes = [16, 256], strides = [1, 1]} : vector<16x512xf32> to vector<16x256xf32>
    %4 = vector.extract_strided_slice %2 {offsets = [0, 256], sizes = [16, 128], strides = [1, 1]} : vector<16x512xf32> to vector<16x128xf32>
    %5 = vector.extract_strided_slice %2 {offsets = [0, 384], sizes = [16, 128], strides = [1, 1]} : vector<16x512xf32> to vector<16x128xf32>
    %c0_3 = arith.constant 0 : index
    %c0_4 = arith.constant 0 : index
    %6 = vector.load %arg3[%c0_3, %c0_4] : memref<256x128xf32, #tpu.memory_space<vmem>>, vector<256x128xf32>
    %cst_5 = arith.constant dense<0.000000e+00> : vector<16x128xf32>
    %7 = tpu.matmul %3, %6, %cst_5 {dimension_numbers = #tpu.dot_dimension_numbers<[1], [0], [0], [1], [0, 0, 1, 1], [], []>} : vector<16x256xf32>, vector<256x128xf32>, vector<16x128xf32> -> vector<16x128xf32>
    %8 = arith.mulf %3, %3 : vector<16x256xf32>
    %c0_6 = arith.constant 0 : index
    %c0_7 = arith.constant 0 : index
    %9 = vector.load %arg3[%c0_6, %c0_7] : memref<256x128xf32, #tpu.memory_space<vmem>>, vector<256x128xf32>
    %cst_8 = arith.constant dense<0.000000e+00> : vector<16x128xf32>
    %10 = tpu.matmul %8, %9, %cst_8 {dimension_numbers = #tpu.dot_dimension_numbers<[1], [0], [0], [1], [0, 0, 1, 1], [], []>} : vector<16x256xf32>, vector<256x128xf32>, vector<16x128xf32> -> vector<16x128xf32>
    %cst_9 = arith.constant 6.250000e-02 : f32
    %11 = vector.broadcast %cst_9 : f32 to vector<16x128xf32>
    %12 = arith.mulf %7, %11 : vector<16x128xf32>
    %13 = arith.mulf %12, %7 : vector<16x128xf32>
    %14 = arith.subf %10, %13 : vector<16x128xf32>
    %cst_10 = arith.constant 0.0666666701 : f32
    %15 = vector.broadcast %cst_10 : f32 to vector<16x128xf32>
    %16 = arith.mulf %14, %15 : vector<16x128xf32>
    %cst_11 = arith.constant 0.000000e+00 : f32
    %17 = vector.broadcast %cst_11 : f32 to vector<16x128xf32>
    %18 = arith.maximumf %16, %17 : vector<16x128xf32>
    %19 = math.sqrt %18 : vector<16x128xf32>
    %cst_12 = arith.constant 1.000000e-07 : f32
    %20 = vector.broadcast %cst_12 : f32 to vector<16x128xf32>
    %21 = arith.addf %19, %20 : vector<16x128xf32>
    %22 = arith.divf %5, %21 : vector<16x128xf32>
    %23 = arith.mulf %12, %22 : vector<16x128xf32>
    %24 = arith.subf %4, %23 : vector<16x128xf32>
    %c0_13 = arith.constant 0 : index
    %c0_14 = arith.constant 0 : index
    %25 = vector.load %arg4[%c0_13, %c0_14] : memref<128x256xf32, #tpu.memory_space<vmem>>, vector<128x256xf32>
    %cst_15 = arith.constant dense<0.000000e+00> : vector<16x256xf32>
    %26 = tpu.matmul %22, %25, %cst_15 {dimension_numbers = #tpu.dot_dimension_numbers<[1], [0], [0], [1], [0, 0, 1, 1], [], []>} : vector<16x128xf32>, vector<128x256xf32>, vector<16x256xf32> -> vector<16x256xf32>
    %c0_16 = arith.constant 0 : index
    %c0_17 = arith.constant 0 : index
    %27 = vector.load %arg4[%c0_16, %c0_17] : memref<128x256xf32, #tpu.memory_space<vmem>>, vector<128x256xf32>
    %cst_18 = arith.constant dense<0.000000e+00> : vector<16x256xf32>
    %28 = tpu.matmul %24, %27, %cst_18 {dimension_numbers = #tpu.dot_dimension_numbers<[1], [0], [0], [1], [0, 0, 1, 1], [], []>} : vector<16x128xf32>, vector<128x256xf32>, vector<16x256xf32> -> vector<16x256xf32>
    %29 = arith.mulf %3, %26 : vector<16x256xf32>
    %30 = arith.addf %29, %28 : vector<16x256xf32>
    %cst_19 = arith.constant 0.000000e+00 : f32
    %31 = vector.broadcast %cst_19 : f32 to vector<16x256xf32>
    %32 = arith.maximumf %30, %31 : vector<16x256xf32>
    %c0_20 = arith.constant 0 : index
    %c0_21 = arith.constant 0 : index
    %33 = vector.load %arg5[%c0_20, %c0_21] : memref<16x256xf32, #tpu.memory_space<vmem>>, vector<16x256xf32>
    tpu.vector_store %arg5[%c0_20, %c0_21], %32 {strides = array<i32>} : memref<16x256xf32, #tpu.memory_space<vmem>>, vector<16x256xf32>,
    return
  }
  func.func @transform_0(%arg0: i32) -> (i32, i32) {
    %c0_i32 = arith.constant 0 : i32
    %c0_i32_0 = arith.constant 0 : i32
    return %arg0, %c0_i32 : i32, i32
  }
  func.func @transform_1(%arg0: i32) -> (i32, i32) {
    %c0_i32 = arith.constant 0 : i32
    %c0_i32_0 = arith.constant 0 : i32
    %c0_i32_1 = arith.constant 0 : i32
    return %c0_i32, %c0_i32_0 : i32, i32
  }
  func.func @transform_2(%arg0: i32) -> (i32, i32) {
    %c0_i32 = arith.constant 0 : i32
    %c0_i32_0 = arith.constant 0 : i32
    %c0_i32_1 = arith.constant 0 : i32
    return %c0_i32, %c0_i32_0 : i32, i32
  }
  func.func @transform_3(%arg0: i32) -> (i32, i32) {
    %c0_i32 = arith.constant 0 : i32
    %c0_i32_0 = arith.constant 0 : i32
    %c0_i32_1 = arith.constant 0 : i32
    return %c0_i32, %c0_i32_0 : i32, i32
  }
  func.func @transform_4(%arg0: i32) -> (i32, i32) {
    %c0_i32 = arith.constant 0 : i32
    %c0_i32_0 = arith.constant 0 : i32
    return %arg0, %c0_i32 : i32, i32
  }
}

</mosaic_0001>

<llo_original>
// kernel: forward.1
$region0: #{forward.1}
  #allocation0 [shape = 'u32[]', space=smem, size = 0x4, offset = 0x4, fixed_abs, tag = 'smem constant byte address 0x4 - core index']
  #allocation1 [shape = 'u32[144,128]{1,0:T(1,128)}', space=vmem, size = 0x12000, scoped, tag = 'internal scratch']
  %s0 = inlined_call_operand.vmem [shape: f32[16,128], index: 0, kind: input, shape index: {}]
  %s1 = inlined_call_operand.hbm [shape: f32[128,512], index: 1, kind: input, shape index: {}]
  %s2 = inlined_call_operand.hbm [shape: f32[256,128], index: 2, kind: input, shape index: {}]
  %s3 = inlined_call_operand.hbm [shape: f32[128,256], index: 3, kind: input, shape index: {}]
  %s4 = inlined_call_operand.vmem [shape: f32[16,256], index: 4, kind: output, shape index: {}]
  %s5 = sld [smem:[#allocation0]]
  $region38: #{forward.1} parent=0
    _
  %s7 = ssub.s32 1, %s5
  %s8 = scalar_select 0, %s7, %s5
  $region1: #{forward.1} parent=0
    #allocation2 [shape = 'u8[262144]{0}', space=vmem, size = 0x40000, scoped, tag = 'input window, operand 1, single buffered']
    #allocation3 [shape = 's32[1]{0}', space=sflag, size = 0x4, scoped, tag = 'scoped memory for forward.1']
    #allocation4 [shape = 'u8[131072]{0}', space=vmem, size = 0x20000, scoped, tag = 'input window, operand 2, single buffered']
    #allocation5 [shape = 's32[1]{0}', space=sflag, size = 0x4, scoped, tag = 'scoped memory for forward.1']
    #allocation6 [shape = 'u8[131072]{0}', space=vmem, size = 0x20000, scoped, tag = 'input window, operand 3, single buffered']
    %9 = vsyncpa [#allocation3], 0
    %10 = vsyncpa [#allocation5], 0
    // Predicated region
    $region2: #{forward.1} parent=1 // pred_check
      _
    $region3: #{forward.1} parent=1 // pred_check_branch
      %12 = sbr.rel (0) target = $region5
    $region4: #{forward.1} parent=1 // pred_region
      _
    $region5: #{forward.1} parent=1 // pred_fallthru
      _
    // Predicated region
    $region6: #{forward.1} parent=1 // pred_check
      _
    $region7: #{forward.1} parent=1 // pred_check_branch
      %14 = sbr.rel (0) target = $region9
    $region8: #{forward.1} parent=1 // pred_region
      %s16 = ssub.s32 8192, 8192
      %17 = vsyncadd [#allocation3], %s16
      %s18 = sshll.u32 [#allocation2], 4
      %s19 = int_to_ptr.vmem [resolvable:$true] %s18
      %24 = dma.hbm_to_vmem [thread:$0]  %s1, 8192, %s19, [#allocation3], 512, 512, 32
    $region9: #{forward.1} parent=1 // pred_fallthru
      _
    // Predicated region
    $region10: #{forward.1} parent=1 // pred_check
      _
    $region11: #{forward.1} parent=1 // pred_check_branch
      %26 = sbr.rel (0) target = $region13
    $region12: #{forward.1} parent=1 // pred_region
      %s28 = ssub.s32 4096, 4096
      %29 = vsyncadd [#allocation5], %s28
      %s30 = sshll.u32 [#allocation4], 4
      %s31 = int_to_ptr.vmem [resolvable:$true] %s30
      %36 = dma.hbm_to_vmem [thread:$0]  %s2, 4096, %s31, [#allocation5], 128, 128, 8
    $region13: #{forward.1} parent=1 // pred_fallthru
      _
    // Predicated region
    $region14: #{forward.1} parent=1 // pred_check
      _
    $region15: #{forward.1} parent=1 // pred_check_branch
      %38 = sbr.rel (0) target = $region17
    $region16: #{forward.1} parent=1 // pred_region
      %s40 = ssub.s32 4096, 4096
      %41 = vsyncadd [#allocation5], %s40
      %s42 = sshll.u32 [#allocation6], 4
      %s43 = int_to_ptr.vmem [resolvable:$true] %s42
      %48 = dma.hbm_to_vmem [thread:$0]  %s3, 4096, %s43, [#allocation5], 256, 256, 16
    $region17: #{forward.1} parent=1 // pred_fallthru
      _
    // Predicated region
    $region18: #{forward.1} parent=1 // pred_check
      _
    $region19: #{forward.1} parent=1 // pred_check_branch
      %50 = sbr.rel (0) target = $region21
    $region20: #{forward.1} parent=1 // pred_region
      %51 = dma.done [#allocation3], 8192
    $region21: #{forward.1} parent=1 // pred_fallthru
      _
    // Predicated region
    $region22: #{forward.1} parent=1 // pred_check
      _
    $region23: #{forward.1} parent=1 // pred_check_branch
      %53 = sbr.rel (0) target = $region25
    $region24: #{forward.1} parent=1 // pred_region
      %54 = dma.done [#allocation5], 4096
    $region25: #{forward.1} parent=1 // pred_fallthru
      _
    // Predicated region
    $region26: #{forward.1} parent=1 // pred_check
      _
    $region27: #{forward.1} parent=1 // pred_check_branch
      %56 = sbr.rel (0) target = $region29
    $region28: #{forward.1} parent=1 // pred_region
      %57 = dma.done [#allocation5], 4096
    $region29: #{forward.1} parent=1 // pred_fallthru
      _
    %v58 = vld [vmem:[%s0] sm:$0xff]
    %v59 = vld [vmem:[%s0 + $0x8] sm:$0xff]
    %v60 = vld [vmem:[#allocation2] sm:$0xff]
    %v61 = vld [vmem:[#allocation2 + $0x8] sm:$0xff]
    %v62 = vld [vmem:[#allocation2 + $0x10] sm:$0xff]
    %v63 = vld [vmem:[#allocation2 + $0x18] sm:$0xff]
    %v64 = vld [vmem:[#allocation2 + $0x20] sm:$0xff]
    %v65 = vld [vmem:[#allocation2 + $0x28] sm:$0xff]
    %v66 = vld [vmem:[#allocation2 + $0x30] sm:$0xff]
    %v67 = vld [vmem:[#allocation2 + $0x38] sm:$0xff]
    %v68 = vld [vmem:[#allocation2 + $0x40] sm:$0xff]
    %v69 = vld [vmem:[#allocation2 + $0x48] sm:$0xff]
    %v70 = vld [vmem:[#allocation2 + $0x50] sm:$0xff]
    %v71 = vld [vmem:[#allocation2 + $0x58] sm:$0xff]
    %v72 = vld [vmem:[#allocation2 + $0x60] sm:$0xff]
    %v73 = vld [vmem:[#allocation2 + $0x68] sm:$0xff]
    %v74 = vld [vmem:[#allocation2 + $0x70] sm:$0xff]
    %v75 = vld [vmem:[#allocation2 + $0x78] sm:$0xff]
    %v76 = vld [vmem:[#allocation2 + $0x80] sm:$0xff]
    %v77 = vld [vmem:[#allocation2 + $0x88] sm:$0xff]
    %v78 = vld [vmem:[#allocation2 + $0x90] sm:$0xff]
    %v79 = vld [vmem:[#allocation2 + $0x98] sm:$0xff]
    %v80 = vld [vmem:[#allocation2 + $0xa0] sm:$0xff]
    %v81 = vld [vmem:[#allocation2 + $0xa8] sm:$0xff]
    %v82 = vld [vmem:[#allocation2 + $0xb0] sm:$0xff]
    %v83 = vld [vmem:[#allocation2 + $0xb8] sm:$0xff]
    %v84 = vld [vmem:[#allocation2 + $0xc0] sm:$0xff]
    %v85 = vld [vmem:[#allocation2 + $0xc8] sm:$0xff]
    %v86 = vld [vmem:[#allocation2 + $0xd0] sm:$0xff]
    %v87 = vld [vmem:[#allocation2 + $0xd8] sm:$0xff]
    %v88 = vld [vmem:[#allocation2 + $0xe0] sm:$0xff]
    %v89 = vld [vmem:[#allocation2 + $0xe8] sm:$0xff]
    %v90 = vld [vmem:[#allocation2 + $0xf0] sm:$0xff]
    %v91 = vld [vmem:[#allocation2 + $0xf8] sm:$0xff]
    %v92 = vld [vmem:[#allocation2 + $0x100] sm:$0xff]
    %v93 = vld [vmem:[#allocation2 + $0x108] sm:$0xff]
    %v94 = vld [vmem:[#allocation2 + $0x110] sm:$0xff]
    %v95 = vld [vmem:[#allocation2 + $0x118] sm:$0xff]
    %v96 = vld [vmem:[#allocation2 + $0x120] sm:$0xff]
    %v97 = vld [vmem:[#allocation2 + $0x128] sm:$0xff]
    %v98 = vld [vmem:[#allocation2 + $0x130] sm:$0xff]
    %v99 = vld [vmem:[#allocation2 + $0x138] sm:$0xff]
    %v100 = vld [vmem:[#allocation2 + $0x140] sm:$0xff]
    %v101 = vld [vmem:[#allocation2 + $0x148] sm:$0xff]
    %v102 = vld [vmem:[#allocation2 + $0x150] sm:$0xff]
    %v103 = vld [vmem:[#allocation2 + $0x158] sm:$0xff]
    %v104 = vld [vmem:[#allocation2 + $0x160] sm:$0xff]
    %v105 = vld [vmem:[#allocation2 + $0x168] sm:$0xff]
    %v106 = vld [vmem:[#allocation2 + $0x170] sm:$0xff]
    %v107 = vld [vmem:[#allocation2 + $0x178] sm:$0xff]
    %v108 = vld [vmem:[#allocation2 + $0x180] sm:$0xff]
    %v109 = vld [vmem:[#allocation2 + $0x188] sm:$0xff]
    %v110 = vld [vmem:[#allocation2 + $0x190] sm:$0xff]
    %v111 = vld [vmem:[#allocation2 + $0x198] sm:$0xff]
    %v112 = vld [vmem:[#allocation2 + $0x1a0] sm:$0xff]
    %v113 = vld [vmem:[#allocation2 + $0x1a8] sm:$0xff]
    %v114 = vld [vmem:[#allocation2 + $0x1b0] sm:$0xff]
    %v115 = vld [vmem:[#allocation2 + $0x1b8] sm:$0xff]
    %v116 = vld [vmem:[#allocation2 + $0x1c0] sm:$0xff]
    %v117 = vld [vmem:[#allocation2 + $0x1c8] sm:$0xff]
    %v118 = vld [vmem:[#allocation2 + $0x1d0] sm:$0xff]
    %v119 = vld [vmem:[#allocation2 + $0x1d8] sm:$0xff]
    %v120 = vld [vmem:[#allocation2 + $0x1e0] sm:$0xff]
    %v121 = vld [vmem:[#allocation2 + $0x1e8] sm:$0xff]
    %v122 = vld [vmem:[#allocation2 + $0x1f0] sm:$0xff]
    %v123 = vld [vmem:[#allocation2 + $0x1f8] sm:$0xff]
    %124 = vmatprep.subr.mxu0 %v61
    %125 = vmatpush1.msra.mxu0 %v60
    %126 = vmatprep.subr.mxu0 %v65
    %127 = vmatpush1.msra.mxu0 %v64
    %128 = vmatprep.subr.mxu0 %v69
    %129 = vmatpush1.msra.mxu0 %v68
    %130 = vmatprep.subr.mxu0 %v73
    %131 = vmatpush1.msra.mxu0 %v72
    %132 = vmatprep.subr.mxu0 %v77
    %133 = vmatpush1.msra.mxu0 %v76
    %134 = vmatprep.subr.mxu0 %v81
    %135 = vmatpush1.msra.mxu0 %v80
    %136 = vmatprep.subr.mxu0 %v85
    %137 = vmatpush1.msra.mxu0 %v84
    %138 = vmatprep.subr.mxu0 %v89
    %139 = vmatpush1.msra.mxu0 %v88
    %140 = vmatprep.subr.mxu0 %v93
    %141 = vmatpush1.msra.mxu0 %v92
    %142 = vmatprep.subr.mxu0 %v97
    %143 = vmatpush1.msra.mxu0 %v96
    %144 = vmatprep.subr.mxu0 %v101
    %145 = vmatpush1.msra.mxu0 %v100
    %146 = vmatprep.subr.mxu0 %v105
    %147 = vmatpush1.msra.mxu0 %v104
    %148 = vmatprep.subr.mxu0 %v109
    %149 = vmatpush1.msra.mxu0 %v108
    %150 = vmatprep.subr.mxu0 %v113
    %151 = vmatpush1.msra.mxu0 %v112
    %152 = vmatprep.subr.mxu0 %v117
    %153 = vmatpush1.msra.mxu0 %v116
    %154 = vmatprep.subr.mxu0 %v121
    %155 = vmatpush1.msra.mxu0 %v120
    %156 = vmatprep.subr.mxu0 0.0
    %157 = vmatpush1.msra.mxu0 0.0
    %158 = vmatprep.subr.mxu0 0.0
    %159 = vmatpush1.msra.mxu0 0.0
    %160 = vmatprep.subr.mxu0 0.0
    %161 = vmatpush1.msra.mxu0 0.0
    %162 = vmatprep.subr.mxu0 0.0
    %163 = vmatpush1.msra.mxu0 0.0
    %164 = vmatprep.subr.mxu0 0.0
    %165 = vmatpush1.msra.mxu0 0.0
    %166 = vmatprep.subr.mxu0 0.0
    %167 = vmatpush1.msra.mxu0 0.0
    %168 = vmatprep.subr.mxu0 0.0
    %169 = vmatpush1.msra.mxu0 0.0
    %170 = vmatprep.subr.mxu0 0.0
    %171 = vmatpush1.msra.mxu0 0.0
    %172 = vmatprep.subr.mxu0 0.0
    %173 = vmatpush1.msra.mxu0 0.0
    %174 = vmatprep.subr.mxu0 0.0
    %175 = vmatpush1.msra.mxu0 0.0
    %176 = vmatprep.subr.mxu0 0.0
    %177 = vmatpush1.msra.mxu0 0.0
    %178 = vmatprep.subr.mxu0 0.0
    %179 = vmatpush1.msra.mxu0 0.0
    %180 = vmatprep.subr.mxu0 0.0
    %181 = vmatpush1.msra.mxu0 0.0
    %182 = vmatprep.subr.mxu0 0.0
    %183 = vmatpush1.msra.mxu0 0.0
    %184 = vmatprep.subr.mxu0 0.0
    %185 = vmatpush1.msra.mxu0 0.0
    %186 = vmatprep.subr.mxu0 0.0
    %187 = vmatpush1.msra.mxu0 0.0
    %188 = vmatprep.mubr.f32.mxu0 0.0
    %189 = vmatmul.mubr.f32.gmra.mrb[0].mxu0 %v58
    %v190 = vpop.f32.mrb[0].mxu0
    %v191 = vadd.f32 0.0, %v190
    %v192 = vpop.f32.mrb[0].mxu0
    %v193 = vadd.f32 0.0, %v192
    %194 = vmatprep.mubr.f32.mxu0 0.0
    %195 = vmatmul.mubr.f32.gmra.mrb[0].mxu0 %v59
    %v196 = vpop.f32.mrb[0].mxu0
    %v197 = vadd.f32 0.0, %v196
    %v198 = vpop.f32.mrb[0].mxu0
    %v199 = vadd.f32 0.0, %v198
    %200 = vdwg.mxu0
    %201 = vmatprep.subr.mxu0 %v63
    %202 = vmatpush1.msra.mxu0 %v62
    %203 = vmatprep.subr.mxu0 %v67
    %204 = vmatpush1.msra.mxu0 %v66
    %205 = vmatprep.subr.mxu0 %v71
    %206 = vmatpush1.msra.mxu0 %v70
    %207 = vmatprep.subr.mxu0 %v75
    %208 = vmatpush1.msra.mxu0 %v74
    %209 = vmatprep.subr.mxu0 %v79
    %210 = vmatpush1.msra.mxu0 %v78
    %211 = vmatprep.subr.mxu0 %v83
    %212 = vmatpush1.msra.mxu0 %v82
    %213 = vmatprep.subr.mxu0 %v87
    %214 = vmatpush1.msra.mxu0 %v86
    %215 = vmatprep.subr.mxu0 %v91
    %216 = vmatpush1.msra.mxu0 %v90
    %217 = vmatprep.subr.mxu0 %v95
    %218 = vmatpush1.msra.mxu0 %v94
    %219 = vmatprep.subr.mxu0 %v99
    %220 = vmatpush1.msra.mxu0 %v98
    %221 = vmatprep.subr.mxu0 %v103
    %222 = vmatpush1.msra.mxu0 %v102
    %223 = vmatprep.subr.mxu0 %v107
    %224 = vmatpush1.msra.mxu0 %v106
    %225 = vmatprep.subr.mxu0 %v111
    %226 = vmatpush1.msra.mxu0 %v110
    %227 = vmatprep.subr.mxu0 %v115
    %228 = vmatpush1.msra.mxu0 %v114
    %229 = vmatprep.subr.mxu0 %v119
    %230 = vmatpush1.msra.mxu0 %v118
    %231 = vmatprep.subr.mxu0 %v123
    %232 = vmatpush1.msra.mxu0 %v122
    %233 = vmatprep.subr.mxu0 0.0
    %234 = vmatpush1.msra.mxu0 0.0
    %235 = vmatprep.subr.mxu0 0.0
    %236 = vmatpush1.msra.mxu0 0.0
    %237 = vmatprep.subr.mxu0 0.0
    %238 = vmatpush1.msra.mxu0 0.0
    %239 = vmatprep.subr.mxu0 0.0
    %240 = vmatpush1.msra.mxu0 0.0
    %241 = vmatprep.subr.mxu0 0.0
    %242 = vmatpush1.msra.mxu0 0.0
    %243 = vmatprep.subr.mxu0 0.0
    %244 = vmatpush1.msra.mxu0 0.0
    %245 = vmatprep.subr.mxu0 0.0
    %246 = vmatpush1.msra.mxu0 0.0
    %247 = vmatprep.subr.mxu0 0.0
    %248 = vmatpush1.msra.mxu0 0.0
    %249 = vmatprep.subr.mxu0 0.0
    %250 = vmatpush1.msra.mxu0 0.0
    %251 = vmatprep.subr.mxu0 0.0
    %252 = vmatpush1.msra.mxu0 0.0
    %253 = vmatprep.subr.mxu0 0.0
    %254 = vmatpush1.msra.mxu0 0.0
    %255 = vmatprep.subr.mxu0 0.0
    %256 = vmatpush1.msra.mxu0 0.0
    %257 = vmatprep.subr.mxu0 0.0
    %258 = vmatpush1.msra.mxu0 0.0
    %259 = vmatprep.subr.mxu0 0.0
    %260 = vmatpush1.msra.mxu0 0.0
    %261 = vmatprep.subr.mxu0 0.0
    %262 = vmatpush1.msra.mxu0 0.0
    %263 = vmatprep.subr.mxu0 0.0
    %264 = vmatpush1.msra.mxu0 0.0
    %265 = vmatprep.mubr.f32.mxu0 0.0
    %266 = vmatmul.mubr.f32.gmra.mrb[0].mxu0 %v58
    %v267 = vpop.f32.mrb[0].mxu0
    %v268 = vadd.f32 0.0, %v267
    %v269 = vpop.f32.mrb[0].mxu0
    %v270 = vadd.f32 0.0, %v269
    %271 = vmatprep.mubr.f32.mxu0 0.0
    %272 = vmatmul.mubr.f32.gmra.mrb[0].mxu0 %v59
    %v273 = vpop.f32.mrb[0].mxu0
    %v274 = vadd.f32 0.0, %v273
    %v275 = vpop.f32.mrb[0].mxu0
    %v276 = vadd.f32 0.0, %v275
    %277 = vdwg.mxu0
    %v278 = vld [vmem:[#allocation4] sm:$0xff]
    %v279 = vld [vmem:[#allocation4 + $0x8] sm:$0xff]
    %v280 = vld [vmem:[#allocation4 + $0x10] sm:$0xff]
    %v281 = vld [vmem:[#allocation4 + $0x18] sm:$0xff]
    %v282 = vld [vmem:[#allocation4 + $0x20] sm:$0xff]
    %v283 = vld [vmem:[#allocation4 + $0x28] sm:$0xff]
    %v284 = vld [vmem:[#allocation4 + $0x30] sm:$0xff]
    %v285 = vld [vmem:[#allocation4 + $0x38] sm:$0xff]
    %v286 = vld [vmem:[#allocation4 + $0x40] sm:$0xff]
    %v287 = vld [vmem:[#allocation4 + $0x48] sm:$0xff]
    %v288 = vld [vmem:[#allocation4 + $0x50] sm:$0xff]
    %v289 = vld [vmem:[#allocation4 + $0x58] sm:$0xff]
    %v290 = vld [vmem:[#allocation4 + $0x60] sm:$0xff]
    %v291 = vld [vmem:[#allocation4 + $0x68] sm:$0xff]
    %v292 = vld [vmem:[#allocation4 + $0x70] sm:$0xff]
    %v293 = vld [vmem:[#allocation4 + $0x78] sm:$0xff]
    %v294 = vld [vmem:[#allocation4 + $0x80] sm:$0xff]
    %v295 = vld [vmem:[#allocation4 + $0x88] sm:$0xff]
    %v296 = vld [vmem:[#allocation4 + $0x90] sm:$0xff]
    %v297 = vld [vmem:[#allocation4 + $0x98] sm:$0xff]
    %v298 = vld [vmem:[#allocation4 + $0xa0] sm:$0xff]
    %v299 = vld [vmem:[#allocation4 + $0xa8] sm:$0xff]
    %v300 = vld [vmem:[#allocation4 + $0xb0] sm:$0xff]
    %v301 = vld [vmem:[#allocation4 + $0xb8] sm:$0xff]
    %v302 = vld [vmem:[#allocation4 + $0xc0] sm:$0xff]
    %v303 = vld [vmem:[#allocation4 + $0xc8] sm:$0xff]
    %v304 = vld [vmem:[#allocation4 + $0xd0] sm:$0xff]
    %v305 = vld [vmem:[#allocation4 + $0xd8] sm:$0xff]
    %v306 = vld [vmem:[#allocation4 + $0xe0] sm:$0xff]
    %v307 = vld [vmem:[#allocation4 + $0xe8] sm:$0xff]
    %v308 = vld [vmem:[#allocation4 + $0xf0] sm:$0xff]
    %v309 = vld [vmem:[#allocation4 + $0xf8] sm:$0xff]
    %310 = vmatprep.subr.mxu0 0.0
    %311 = vmatpush1.msra.mxu0 %v278
    %312 = vmatprep.subr.mxu0 0.0
    %313 = vmatpush1.msra.mxu0 %v279
    %314 = vmatprep.subr.mxu0 0.0
    %315 = vmatpush1.msra.mxu0 %v280
    %316 = vmatprep.subr.mxu0 0.0
    %317 = vmatpush1.msra.mxu0 %v281
    %318 = vmatprep.subr.mxu0 0.0
    %319 = vmatpush1.msra.mxu0 %v282
    %320 = vmatprep.subr.mxu0 0.0
    %321 = vmatpush1.msra.mxu0 %v283
    %322 = vmatprep.subr.mxu0 0.0
    %323 = vmatpush1.msra.mxu0 %v284
    %324 = vmatprep.subr.mxu0 0.0
    %325 = vmatpush1.msra.mxu0 %v285
    %326 = vmatprep.subr.mxu0 0.0
    %327 = vmatpush1.msra.mxu0 %v286
    %328 = vmatprep.subr.mxu0 0.0
    %329 = vmatpush1.msra.mxu0 %v287
    %330 = vmatprep.subr.mxu0 0.0
    %331 = vmatpush1.msra.mxu0 %v288
    %332 = vmatprep.subr.mxu0 0.0
    %333 = vmatpush1.msra.mxu0 %v289
    %334 = vmatprep.subr.mxu0 0.0
    %335 = vmatpush1.msra.mxu0 %v290
    %336 = vmatprep.subr.mxu0 0.0
    %337 = vmatpush1.msra.mxu0 %v291
    %338 = vmatprep.subr.mxu0 0.0
    %339 = vmatpush1.msra.mxu0 %v292
    %340 = vmatprep.subr.mxu0 0.0
    %341 = vmatpush1.msra.mxu0 %v293
    %342 = vmatprep.subr.mxu0 0.0
    %343 = vmatpush1.msra.mxu0 %v294
    %344 = vmatprep.subr.mxu0 0.0
    %345 = vmatpush1.msra.mxu0 %v295
    %346 = vmatprep.subr.mxu0 0.0
    %347 = vmatpush1.msra.mxu0 %v296
    %348 = vmatprep.subr.mxu0 0.0
    %349 = vmatpush1.msra.mxu0 %v297
    %350 = vmatprep.subr.mxu0 0.0
    %351 = vmatpush1.msra.mxu0 %v298
    %352 = vmatprep.subr.mxu0 0.0
    %353 = vmatpush1.msra.mxu0 %v299
    %354 = vmatprep.subr.mxu0 0.0
    %355 = vmatpush1.msra.mxu0 %v300
    %356 = vmatprep.subr.mxu0 0.0
    %357 = vmatpush1.msra.mxu0 %v301
    %358 = vmatprep.subr.mxu0 0.0
    %359 = vmatpush1.msra.mxu0 %v302
    %360 = vmatprep.subr.mxu0 0.0
    %361 = vmatpush1.msra.mxu0 %v303
    %362 = vmatprep.subr.mxu0 0.0
    %363 = vmatpush1.msra.mxu0 %v304
    %364 = vmatprep.subr.mxu0 0.0
    %365 = vmatpush1.msra.mxu0 %v305
    %366 = vmatprep.subr.mxu0 0.0
    %367 = vmatpush1.msra.mxu0 %v306
    %368 = vmatprep.subr.mxu0 0.0
    %369 = vmatpush1.msra.mxu0 %v307
    %370 = vmatprep.subr.mxu0 0.0
    %371 = vmatpush1.msra.mxu0 %v308
    %372 = vmatprep.subr.mxu0 0.0
    %373 = vmatpush1.msra.mxu0 %v309
    %374 = vmatprep.mubr.f32.mxu0 %v193
    %375 = vmatmul.mubr.f32.gmra.mrb[0].mxu0 %v191
    %v376 = vpop.f32.mrb[0].mxu0
    %v377 = vadd.f32 0.0, %v376
    %v378 = vpop.f32.mrb[0].mxu0
    %379 = vmatprep.mubr.f32.mxu0 %v199
    %380 = vmatmul.mubr.f32.gmra.mrb[0].mxu0 %v197
    %v381 = vpop.f32.mrb[0].mxu0
    %v382 = vadd.f32 0.0, %v381
    %v383 = vpop.f32.mrb[0].mxu0
    %384 = vdwg.mxu0
    %v385 = vmul.f32 %v191, %v191
    %v386 = vmul.f32 %v193, %v193
    %v387 = vmul.f32 %v197, %v197
    %v388 = vmul.f32 %v199, %v199
    %389 = vmatprep.subr.mxu0 0.0
    %390 = vmatpush1.msra.mxu0 %v278
    %391 = vmatprep.subr.mxu0 0.0
    %392 = vmatpush1.msra.mxu0 %v279
    %393 = vmatprep.subr.mxu0 0.0
    %394 = vmatpush1.msra.mxu0 %v280
    %395 = vmatprep.subr.mxu0 0.0
    %396 = vmatpush1.msra.mxu0 %v281
    %397 = vmatprep.subr.mxu0 0.0
    %398 = vmatpush1.msra.mxu0 %v282
    %399 = vmatprep.subr.mxu0 0.0
    %400 = vmatpush1.msra.mxu0 %v283
    %401 = vmatprep.subr.mxu0 0.0
    %402 = vmatpush1.msra.mxu0 %v284
    %403 = vmatprep.subr.mxu0 0.0
    %404 = vmatpush1.msra.mxu0 %v285
    %405 = vmatprep.subr.mxu0 0.0
    %406 = vmatpush1.msra.mxu0 %v286
    %407 = vmatprep.subr.mxu0 0.0
    %408 = vmatpush1.msra.mxu0 %v287
    %409 = vmatprep.subr.mxu0 0.0
    %410 = vmatpush1.msra.mxu0 %v288
    %411 = vmatprep.subr.mxu0 0.0
    %412 = vmatpush1.msra.mxu0 %v289
    %413 = vmatprep.subr.mxu0 0.0
    %414 = vmatpush1.msra.mxu0 %v290
    %415 = vmatprep.subr.mxu0 0.0
    %416 = vmatpush1.msra.mxu0 %v291
    %417 = vmatprep.subr.mxu0 0.0
    %418 = vmatpush1.msra.mxu0 %v292
    %419 = vmatprep.subr.mxu0 0.0
    %420 = vmatpush1.msra.mxu0 %v293
    %421 = vmatprep.subr.mxu0 0.0
    %422 = vmatpush1.msra.mxu0 %v294
    %423 = vmatprep.subr.mxu0 0.0
    %424 = vmatpush1.msra.mxu0 %v295
    %425 = vmatprep.subr.mxu0 0.0
    %426 = vmatpush1.msra.mxu0 %v296
    %427 = vmatprep.subr.mxu0 0.0
    %428 = vmatpush1.msra.mxu0 %v297
    %429 = vmatprep.subr.mxu0 0.0
    %430 = vmatpush1.msra.mxu0 %v298
    %431 = vmatprep.subr.mxu0 0.0
    %432 = vmatpush1.msra.mxu0 %v299
    %433 = vmatprep.subr.mxu0 0.0
    %434 = vmatpush1.msra.mxu0 %v300
    %435 = vmatprep.subr.mxu0 0.0
    %436 = vmatpush1.msra.mxu0 %v301
    %437 = vmatprep.subr.mxu0 0.0
    %438 = vmatpush1.msra.mxu0 %v302
    %439 = vmatprep.subr.mxu0 0.0
    %440 = vmatpush1.msra.mxu0 %v303
    %441 = vmatprep.subr.mxu0 0.0
    %442 = vmatpush1.msra.mxu0 %v304
    %443 = vmatprep.subr.mxu0 0.0
    %444 = vmatpush1.msra.mxu0 %v305
    %445 = vmatprep.subr.mxu0 0.0
    %446 = vmatpush1.msra.mxu0 %v306
    %447 = vmatprep.subr.mxu0 0.0
    %448 = vmatpush1.msra.mxu0 %v307
    %449 = vmatprep.subr.mxu0 0.0
    %450 = vmatpush1.msra.mxu0 %v308
    %451 = vmatprep.subr.mxu0 0.0
    %452 = vmatpush1.msra.mxu0 %v309
    %453 = vmatprep.mubr.f32.mxu0 %v386
    %454 = vmatmul.mubr.f32.gmra.mrb[0].mxu0 %v385
    %v455 = vpop.f32.mrb[0].mxu0
    %v456 = vadd.f32 0.0, %v455
    %v457 = vpop.f32.mrb[0].mxu0
    %458 = vmatprep.mubr.f32.mxu0 %v388
    %459 = vmatmul.mubr.f32.gmra.mrb[0].mxu0 %v387
    %v460 = vpop.f32.mrb[0].mxu0
    %v461 = vadd.f32 0.0, %v460
    %v462 = vpop.f32.mrb[0].mxu0
    %463 = vdwg.mxu0
    %v464 = vmul.f32 %v377, 0.0625
    %v465 = vmul.f32 %v382, 0.0625
    %v466 = vmul.f32 %v464, %v377
    %v467 = vmul.f32 %v465, %v382
    %v468 = vsub.f32 %v456, %v466
    %v469 = vsub.f32 %v461, %v467
    %v470 = vmul.f32 %v468, 0.06666667
    %v471 = vmul.f32 %v469, 0.06666667
    %v472 = vmax.f32 %v470, 0.0
    %v473 = vmax.f32 %v471, 0.0
    %v474 = vrsqrt.pop %v472
    %v475 = vmul.f32 %v472, %v474
    %vm476 = vcmp.eq.f32.partialorder %v472, inf
    %v477 = vsel %vm476, %v472, %v475
    %vm478 = vcmp.eq.f32.partialorder %v472, 0.0
    %v479 = vand.u32 %v472, 2147483648
    %v480 = vsel %vm478, %v479, %v477
    %v481 = vrsqrt.pop %v473
    %v482 = vmul.f32 %v473, %v481
    %vm483 = vcmp.eq.f32.partialorder %v473, inf
    %v484 = vsel %vm483, %v473, %v482
    %vm485 = vcmp.eq.f32.partialorder %v473, 0.0
    %v486 = vand.u32 %v473, 2147483648
    %v487 = vsel %vm485, %v486, %v484
    %v488 = vadd.f32 %v480, 1e-07
    %v489 = vadd.f32 %v487, 1e-07
    %v490 = vrcp.pop %v488
    %v491 = vmul.f32 %v270, %v490
    %v492 = vrcp.pop %v489
    %v493 = vmul.f32 %v276, %v492
    %v494 = vmul.f32 %v464, %v491
    %v495 = vmul.f32 %v465, %v493
    %v496 = vsub.f32 %v268, %v494
    %v497 = vsub.f32 %v274, %v495
    %v498 = vld [vmem:[#allocation6] sm:$0xff]
    %v499 = vld [vmem:[#allocation6 + $0x8] sm:$0xff]
    %v500 = vld [vmem:[#allocation6 + $0x10] sm:$0xff]
    %v501 = vld [vmem:[#allocation6 + $0x18] sm:$0xff]
    %v502 = vld [vmem:[#allocation6 + $0x20] sm:$0xff]
    %v503 = vld [vmem:[#allocation6 + $0x28] sm:$0xff]
    %v504 = vld [vmem:[#allocation6 + $0x30] sm:$0xff]
    %v505 = vld [vmem:[#allocation6 + $0x38] sm:$0xff]
    %v506 = vld [vmem:[#allocation6 + $0x40] sm:$0xff]
    %v507 = vld [vmem:[#allocation6 + $0x48] sm:$0xff]
    %v508 = vld [vmem:[#allocation6 + $0x50] sm:$0xff]
    %v509 = vld [vmem:[#allocation6 + $0x58] sm:$0xff]
    %v510 = vld [vmem:[#allocation6 + $0x60] sm:$0xff]
    %v511 = vld [vmem:[#allocation6 + $0x68] sm:$0xff]
    %v512 = vld [vmem:[#allocation6 + $0x70] sm:$0xff]
    %v513 = vld [vmem:[#allocation6 + $0x78] sm:$0xff]
    %v514 = vld [vmem:[#allocation6 + $0x80] sm:$0xff]
    %v515 = vld [vmem:[#allocation6 + $0x88] sm:$0xff]
    %v516 = vld [vmem:[#allocation6 + $0x90] sm:$0xff]
    %v517 = vld [vmem:[#allocation6 + $0x98] sm:$0xff]
    %v518 = vld [vmem:[#allocation6 + $0xa0] sm:$0xff]
    %v519 = vld [vmem:[#allocation6 + $0xa8] sm:$0xff]
    %v520 = vld [vmem:[#allocation6 + $0xb0] sm:$0xff]
    %v521 = vld [vmem:[#allocation6 + $0xb8] sm:$0xff]
    %v522 = vld [vmem:[#allocation6 + $0xc0] sm:$0xff]
    %v523 = vld [vmem:[#allocation6 + $0xc8] sm:$0xff]
    %v524 = vld [vmem:[#allocation6 + $0xd0] sm:$0xff]
    %v525 = vld [vmem:[#allocation6 + $0xd8] sm:$0xff]
    %v526 = vld [vmem:[#allocation6 + $0xe0] sm:$0xff]
    %v527 = vld [vmem:[#allocation6 + $0xe8] sm:$0xff]
    %v528 = vld [vmem:[#allocation6 + $0xf0] sm:$0xff]
    %v529 = vld [vmem:[#allocation6 + $0xf8] sm:$0xff]
    %530 = vmatprep.subr.mxu0 %v499
    %531 = vmatpush1.msra.mxu0 %v498
    %532 = vmatprep.subr.mxu0 %v501
    %533 = vmatpush1.msra.mxu0 %v500
    %534 = vmatprep.subr.mxu0 %v503
    %535 = vmatpush1.msra.mxu0 %v502
    %536 = vmatprep.subr.mxu0 %v505
    %537 = vmatpush1.msra.mxu0 %v504
    %538 = vmatprep.subr.mxu0 %v507
    %539 = vmatpush1.msra.mxu0 %v506
    %540 = vmatprep.subr.mxu0 %v509
    %541 = vmatpush1.msra.mxu0 %v508
    %542 = vmatprep.subr.mxu0 %v511
    %543 = vmatpush1.msra.mxu0 %v510
    %544 = vmatprep.subr.mxu0 %v513
    %545 = vmatpush1.msra.mxu0 %v512
    %546 = vmatprep.subr.mxu0 %v515
    %547 = vmatpush1.msra.mxu0 %v514
    %548 = vmatprep.subr.mxu0 %v517
    %549 = vmatpush1.msra.mxu0 %v516
    %550 = vmatprep.subr.mxu0 %v519
    %551 = vmatpush1.msra.mxu0 %v518
    %552 = vmatprep.subr.mxu0 %v521
    %553 = vmatpush1.msra.mxu0 %v520
    %554 = vmatprep.subr.mxu0 %v523
    %555 = vmatpush1.msra.mxu0 %v522
    %556 = vmatprep.subr.mxu0 %v525
    %557 = vmatpush1.msra.mxu0 %v524
    %558 = vmatprep.subr.mxu0 %v527
    %559 = vmatpush1.msra.mxu0 %v526
    %560 = vmatprep.subr.mxu0 %v529
    %561 = vmatpush1.msra.mxu0 %v528
    %562 = vmatprep.subr.mxu0 0.0
    %563 = vmatpush1.msra.mxu0 0.0
    %564 = vmatprep.subr.mxu0 0.0
    %565 = vmatpush1.msra.mxu0 0.0
    %566 = vmatprep.subr.mxu0 0.0
    %567 = vmatpush1.msra.mxu0 0.0
    %568 = vmatprep.subr.mxu0 0.0
    %569 = vmatpush1.msra.mxu0 0.0
    %570 = vmatprep.subr.mxu0 0.0
    %571 = vmatpush1.msra.mxu0 0.0
    %572 = vmatprep.subr.mxu0 0.0
    %573 = vmatpush1.msra.mxu0 0.0
    %574 = vmatprep.subr.mxu0 0.0
    %575 = vmatpush1.msra.mxu0 0.0
    %576 = vmatprep.subr.mxu0 0.0
    %577 = vmatpush1.msra.mxu0 0.0
    %578 = vmatprep.subr.mxu0 0.0
    %579 = vmatpush1.msra.mxu0 0.0
    %580 = vmatprep.subr.mxu0 0.0
    %581 = vmatpush1.msra.mxu0 0.0
    %582 = vmatprep.subr.mxu0 0.0
    %583 = vmatpush1.msra.mxu0 0.0
    %584 = vmatprep.subr.mxu0 0.0
    %585 = vmatpush1.msra.mxu0 0.0
    %586 = vmatprep.subr.mxu0 0.0
    %587 = vmatpush1.msra.mxu0 0.0
    %588 = vmatprep.subr.mxu0 0.0
    %589 = vmatpush1.msra.mxu0 0.0
    %590 = vmatprep.subr.mxu0 0.0
    %591 = vmatpush1.msra.mxu0 0.0
    %592 = vmatprep.subr.mxu0 0.0
    %593 = vmatpush1.msra.mxu0 0.0
    %594 = vmatprep.mubr.f32.mxu0 0.0
    %595 = vmatmul.mubr.f32.gmra.mrb[0].mxu0 %v491
    %v596 = vpop.f32.mrb[0].mxu0
    %v597 = vadd.f32 0.0, %v596
    %v598 = vpop.f32.mrb[0].mxu0
    %v599 = vadd.f32 0.0, %v598
    %600 = vmatprep.mubr.f32.mxu0 0.0
    %601 = vmatmul.mubr.f32.gmra.mrb[0].mxu0 %v493
    %v602 = vpop.f32.mrb[0].mxu0
    %v603 = vadd.f32 0.0, %v602
    %v604 = vpop.f32.mrb[0].mxu0
    %v605 = vadd.f32 0.0, %v604
    %606 = vdwg.mxu0
    %607 = vmatprep.subr.mxu0 %v499
    %608 = vmatpush1.msra.mxu0 %v498
    %609 = vmatprep.subr.mxu0 %v501
    %610 = vmatpush1.msra.mxu0 %v500
    %611 = vmatprep.subr.mxu0 %v503
    %612 = vmatpush1.msra.mxu0 %v502
    %613 = vmatprep.subr.mxu0 %v505
    %614 = vmatpush1.msra.mxu0 %v504
    %615 = vmatprep.subr.mxu0 %v507
    %616 = vmatpush1.msra.mxu0 %v506
    %617 = vmatprep.subr.mxu0 %v509
    %618 = vmatpush1.msra.mxu0 %v508
    %619 = vmatprep.subr.mxu0 %v511
    %620 = vmatpush1.msra.mxu0 %v510
    %621 = vmatprep.subr.mxu0 %v513
    %622 = vmatpush1.msra.mxu0 %v512
    %623 = vmatprep.subr.mxu0 %v515
    %624 = vmatpush1.msra.mxu0 %v514
    %625 = vmatprep.subr.mxu0 %v517
    %626 = vmatpush1.msra.mxu0 %v516
    %627 = vmatprep.subr.mxu0 %v519
    %628 = vmatpush1.msra.mxu0 %v518
    %629 = vmatprep.subr.mxu0 %v521
    %630 = vmatpush1.msra.mxu0 %v520
    %631 = vmatprep.subr.mxu0 %v523
    %632 = vmatpush1.msra.mxu0 %v522
    %633 = vmatprep.subr.mxu0 %v525
    %634 = vmatpush1.msra.mxu0 %v524
    %635 = vmatprep.subr.mxu0 %v527
    %636 = vmatpush1.msra.mxu0 %v526
    %637 = vmatprep.subr.mxu0 %v529
    %638 = vmatpush1.msra.mxu0 %v528
    %639 = vmatprep.subr.mxu0 0.0
    %640 = vmatpush1.msra.mxu0 0.0
    %641 = vmatprep.subr.mxu0 0.0
    %642 = vmatpush1.msra.mxu0 0.0
    %643 = vmatprep.subr.mxu0 0.0
    %644 = vmatpush1.msra.mxu0 0.0
    %645 = vmatprep.subr.mxu0 0.0
    %646 = vmatpush1.msra.mxu0 0.0
    %647 = vmatprep.subr.mxu0 0.0
    %648 = vmatpush1.msra.mxu0 0.0
    %649 = vmatprep.subr.mxu0 0.0
    %650 = vmatpush1.msra.mxu0 0.0
    %651 = vmatprep.subr.mxu0 0.0
    %652 = vmatpush1.msra.mxu0 0.0
    %653 = vmatprep.subr.mxu0 0.0
    %654 = vmatpush1.msra.mxu0 0.0
    %655 = vmatprep.subr.mxu0 0.0
    %656 = vmatpush1.msra.mxu0 0.0
    %657 = vmatprep.subr.mxu0 0.0
    %658 = vmatpush1.msra.mxu0 0.0
    %659 = vmatprep.subr.mxu0 0.0
    %660 = vmatpush1.msra.mxu0 0.0
    %661 = vmatprep.subr.mxu0 0.0
    %662 = vmatpush1.msra.mxu0 0.0
    %663 = vmatprep.subr.mxu0 0.0
    %664 = vmatpush1.msra.mxu0 0.0
    %665 = vmatprep.subr.mxu0 0.0
    %666 = vmatpush1.msra.mxu0 0.0
    %667 = vmatprep.subr.mxu0 0.0
    %668 = vmatpush1.msra.mxu0 0.0
    %669 = vmatprep.subr.mxu0 0.0
    %670 = vmatpush1.msra.mxu0 0.0
    %671 = vmatprep.mubr.f32.mxu0 0.0
    %672 = vmatmul.mubr.f32.gmra.mrb[0].mxu0 %v496
    %v673 = vpop.f32.mrb[0].mxu0
    %v674 = vadd.f32 0.0, %v673
    %v675 = vpop.f32.mrb[0].mxu0
    %v676 = vadd.f32 0.0, %v675
    %677 = vmatprep.mubr.f32.mxu0 0.0
    %678 = vmatmul.mubr.f32.gmra.mrb[0].mxu0 %v497
    %v679 = vpop.f32.mrb[0].mxu0
    %v680 = vadd.f32 0.0, %v679
    %v681 = vpop.f32.mrb[0].mxu0
    %v682 = vadd.f32 0.0, %v681
    %683 = vdwg.mxu0
    %v684 = vmul.f32 %v191, %v597
    %v685 = vmul.f32 %v193, %v599
    %v686 = vmul.f32 %v197, %v603
    %v687 = vmul.f32 %v199, %v605
    %v688 = vadd.f32 %v684, %v674
    %v689 = vadd.f32 %v685, %v676
    %v690 = vadd.f32 %v686, %v680
    %v691 = vadd.f32 %v687, %v682
    %v692 = vmax.f32 %v688, 0.0
    %v693 = vmax.f32 %v689, 0.0
    %v694 = vmax.f32 %v690, 0.0
    %v695 = vmax.f32 %v691, 0.0
    %696 = vst [vmem:[%s4] sm:$0xff] %v692
    %697 = vst [vmem:[%s4 + $0x8] sm:$0xff] %v693
    %698 = vst [vmem:[%s4 + $0x10] sm:$0xff] %v694
    %699 = vst [vmem:[%s4 + $0x18] sm:$0xff] %v695
    // Predicated region
    $region30: #{forward.1} parent=1 // pred_check
      _
    $region31: #{forward.1} parent=1 // pred_check_branch
      %701 = sbr.rel (0) target = $region33
    $region32: #{forward.1} parent=1 // pred_region
      _
    $region33: #{forward.1} parent=1 // pred_fallthru
      _
    // Predicated region
    $region34: #{forward.1} parent=1 // pred_check
      _
    $region35: #{forward.1} parent=1 // pred_check_branch
      %703 = sbr.rel (0) target = $region37
    $region36: #{forward.1} parent=1 // pred_region
      _
    $region37: #{forward.1} parent=1 // pred_fallthru
      _
    %704 = vsyncpa [#allocation3], 1
    %705 = vsyncpa [#allocation5], 1

</llo_original>
